<compile_context>
chip_gen: v6e
topology: v6e:2x2x1
jax: 0.10.0
libtpu: 0.0.40
codegen_flags: <defaults>
</compile_context>

<pallas_src>
import functools

import jax
import jax.numpy as jnp
from jax.experimental import pallas as pl
from jax.experimental.pallas import tpu as pltpu


def _round_up(x, m):
    return ((x + m - 1) // m) * m


def _cdiv(a, b):
    return (a + b - 1) // b


def _choose_tiles(BN, s, d, x_itemsize, *, x_block_vmem_bytes, chunk_rows):
    """Pick (G, cg): samples per grid step and samples per inner compute chunk."""
    # Samples per inner compute chunk: whole samples, multiple of 8, ~chunk_rows
    # rows so the f32 (rows, 128) h1/h2 temporaries stay small.
    cg = max(8, _round_up(max(chunk_rows // s, 1), 8))
    # Samples per grid step, budgeted by the *lane-padded* VMEM footprint of one
    # x slab (a (rows, d) VMEM block is padded to 128 lanes when d < 128).
    padded_row_bytes = _round_up(d, 128) * x_itemsize
    g_budget = (x_block_vmem_bytes // (s * padded_row_bytes)) // cg * cg
    g_budget = max(cg, g_budget)
    # Stay inside the problem (block rows <= array rows for BN >= 8) and keep
    # >= 2 grid steps when possible so v7x can split work across its 2 TCs.
    g_cap = max(8, (BN // 8) * 8)
    if BN >= 16:
        g_cap = min(g_cap, max(8, _round_up(_cdiv(BN, 2), 8)))
    G = min(g_budget, g_cap)
    cg = min(cg, G)
    G = (G // cg) * cg          # whole number of chunks per slab
    return G, cg


def _local_op_kernel(x_ref, w1_ref, w2_ref, sh1_ref, sh2_ref, o_ref, *,
                     s, cg, n_chunks, compute_dtype):
    # x_ref:  (G*s, d)  native input dtype (cast to compute_dtype in-kernel)
    # w1_ref: (d, Cp)   compute dtype, BN1 scale pre-folded
    # w2_ref: (Cp, Cp)  compute dtype, BN2 scale pre-folded
    # sh*:    (1, Cp)   f32 per-channel shifts
    # o_ref:  (G, Cp)   final dtype (x.dtype), lane-dense
    w1 = w1_ref[...]
    w2 = w2_ref[...]
    sh1 = sh1_ref[...]
    sh2 = sh2_ref[...]
    cp = o_ref.shape[-1]
    crows = cg * s

    def compute_chunk(r0, g0):
        xs = x_ref[pl.ds(r0, crows), :].astype(compute_dtype)      # in-kernel cast
        h1 = jnp.dot(xs, w1, preferred_element_type=jnp.float32)   # conv1(k=1)+bn1 scale
        h1 = jnp.maximum(h1 + sh1, 0.0)                            # bn1 shift + relu
        h2 = jnp.dot(h1.astype(compute_dtype), w2,
                     preferred_element_type=jnp.float32)           # conv2(k=1)+bn2 scale
        h2 = jnp.maximum(h2 + sh2, 0.0)                            # bn2 shift + relu
        # per-sample max over the sequence axis s, stored in the final dtype
        o_ref[pl.ds(g0, cg), :] = jnp.max(
            h2.reshape(cg, s, cp), axis=1).astype(o_ref.dtype)

    if n_chunks == 1:
        compute_chunk(0, 0)
    else:
        def body(j, carry):
            compute_chunk(pl.multiple_of(j * crows, crows),
                          pl.multiple_of(j * cg, cg))
            return carry
        jax.lax.fori_loop(0, n_chunks, body, 0)


def local_op(x, w1, w2, bn1, bn2, eps=1e-5, compute_dtype=jnp.bfloat16,
             x_block_vmem_bytes=3 << 20, chunk_rows=256):
    """x: (b, n, s, d); w1: (C, d); w2: (C, C); bn*: dict(gamma, beta, mean, var) of (C,).
    Returns (b, C, n) — identical to the PyTorch Local_op forward (BN in eval mode)."""
    b, n, s, d = x.shape
    C = w1.shape[0]
    BN = b * n

    # Fold BN scale into the conv weights (in f32); keep only the shifts.
    def fold(w_t, bn):
        scale = bn["gamma"] / jnp.sqrt(bn["var"] + eps)             # (C,)
        shift = bn["beta"] - bn["mean"] * scale                     # (C,)
        w_eff = (w_t.astype(jnp.float32) * scale[None, :]).astype(compute_dtype)
        return w_eff, shift.astype(jnp.float32)

    w1_eff, sh1 = fold(w1.T, bn1)     # (d, C), (C,)
    w2_eff, sh2 = fold(w2.T, bn2)     # (C, C), (C,)

    # Lane-dense channel padding; byte-budgeted sample tiling.
    Cp = _round_up(max(C, 128), 128)
    G, cg = _choose_tiles(BN, s, d, x.dtype.itemsize,
                          x_block_vmem_bytes=x_block_vmem_bytes,
                          chunk_rows=chunk_rows)
    rows = G * s
    n_chunks = G // cg

    # permute(0,1,3,2).reshape(-1,d,s) viewed channels-last is exactly
    # x.reshape(b*n, s, d); flattening (b*n, s) is a free contiguous reshape —
    # no wrapper-side cast or pad pass over x.
    xr = x.reshape(BN * s, d)
    BN_eff = BN
    if BN < G:                         # only for tiny BN (< 8); pad up to one slab
        BN_eff = G
        xr = jnp.pad(xr, ((0, (G - BN) * s), (0, 0)))
    num_steps = _cdiv(BN_eff, G)       # ragged tail -> OOB reads, sliced off below

    # Zero-pad weights/shifts to the padded channel count (padded channels stay 0).
    w1_p = jnp.zeros((d, Cp), compute_dtype).at[:, :C].set(w1_eff)
    w2_p = jnp.zeros((Cp, Cp), compute_dtype).at[:C, :C].set(w2_eff)
    sh1_p = jnp.zeros((1, Cp), jnp.float32).at[0, :C].set(sh1)
    sh2_p = jnp.zeros((1, Cp), jnp.float32).at[0, :C].set(sh2)

    flops = 2 * num_steps * rows * (d * Cp + Cp * Cp)
    bytes_accessed = (xr.size * xr.dtype.itemsize
                      + num_steps * G * Cp * x.dtype.itemsize
                      + (w1_p.size + w2_p.size) * w1_p.dtype.itemsize
                      + (sh1_p.size + sh2_p.size) * 4)

    out = pl.pallas_call(
        functools.partial(_local_op_kernel, s=s, cg=cg, n_chunks=n_chunks,
                          compute_dtype=compute_dtype),
        out_shape=jax.ShapeDtypeStruct((num_steps * G, Cp), x.dtype),
        grid=(num_steps,),
        in_specs=[
            pl.BlockSpec((rows, d), lambda i: (i, 0)),   # streaming x slab (native dtype)
            pl.BlockSpec((d, Cp), lambda i: (0, 0)),     # resident (constant block index)
            pl.BlockSpec((Cp, Cp), lambda i: (0, 0)),
            pl.BlockSpec((1, Cp), lambda i: (0, 0)),
            pl.BlockSpec((1, Cp), lambda i: (0, 0)),
        ],
        out_specs=pl.BlockSpec((G, Cp), lambda i: (i, 0)),  # lane-dense (G, 128) slab
        compiler_params=pltpu.CompilerParams(
            dimension_semantics=("parallel",),
            vmem_limit_bytes=32 * 1024 * 1024),
        cost_estimate=pl.CostEstimate(flops=flops, transcendentals=0,
                                      bytes_accessed=bytes_accessed),
    )(xr, w1_p, w2_p, sh1_p, sh2_p)

    out = out[:BN, :C].reshape(b, n, C)
    return jnp.transpose(out, (0, 2, 1))  # (b, C, n)


def local_op_ref(x, w1, w2, bn1, bn2, eps=1e-5):
    """Pure-JAX f32 reference mirroring the PyTorch forward (BN eval mode)."""
    b, n, s, d = x.shape
    C = w1.shape[0]
    xr = x.reshape(b * n, s, d)
    sc1 = bn1["gamma"] / jnp.sqrt(bn1["var"] + eps)
    sh1 = bn1["beta"] - bn1["mean"] * sc1
    sc2 = bn2["gamma"] / jnp.sqrt(bn2["var"] + eps)
    sh2 = bn2["beta"] - bn2["mean"] * sc2
    h1 = jnp.maximum(jnp.einsum("bsd,cd->bsc", xr, w1) * sc1 + sh1, 0.0)
    h2 = jnp.maximum(jnp.einsum("bsc,oc->bso", h1, w2) * sc2 + sh2, 0.0)
    out = jnp.max(h2, axis=1)                      # (b*n, C)
    return jnp.transpose(out.reshape(b, n, C), (0, 2, 1))


if __name__ == "__main__":
    d, C = 16, 32  # in_channels=d=16, out_channels=C=32

    key = jax.random.PRNGKey(0)
    kx, kw1, kw2 = jax.random.split(key, 3)

    # Deterministic parameter init (synthetic; no checkpoint load).
    w1 = jax.random.normal(kw1, (C, d), dtype=jnp.float32) * 0.2
    w2 = jax.random.normal(kw2, (C, C), dtype=jnp.float32) * 0.2
    ramp = jnp.arange(C, dtype=jnp.float32) / C
    bn1 = dict(gamma=1.0 + 0.1 * ramp, beta=0.05 * jnp.ones(C, jnp.float32),
               mean=0.02 * ramp, var=1.0 + 0.2 * ramp)
    bn2 = dict(gamma=1.0 - 0.05 * ramp, beta=-0.03 * jnp.ones(C, jnp.float32),
               mean=-0.01 * ramp, var=1.0 + 0.1 * ramp)

    # Base case, a multi-chunk / 2-grid-step case, and a ragged-tail case.
    for (b, n, s) in [(2, 4, 16), (4, 16, 16), (3, 3, 16)]:
        x = jax.random.normal(jax.random.fold_in(kx, b * 100 + n),
                              (b, n, s, d), dtype=jnp.float32)
        ref = jax.block_until_ready(local_op_ref(x, w1, w2, bn1, bn2))

        # f32 path: near-exact vs. reference.
        out_f32 = jax.block_until_ready(
            local_op(x, w1, w2, bn1, bn2, compute_dtype=jnp.float32))
        assert out_f32.shape == (b, C, n), out_f32.shape
        assert jnp.allclose(out_f32, ref, rtol=1e-4, atol=1e-4), \
            float(jnp.max(jnp.abs(out_f32 - ref)))

        # bf16 MXU path (default): relaxed tolerance, f32 accumulation.
        out_bf16 = jax.block_until_ready(
            local_op(x, w1, w2, bn1, bn2, compute_dtype=jnp.bfloat16))
        assert out_bf16.shape == (b, C, n), out_bf16.shape
        assert jnp.allclose(out_bf16, ref, rtol=5e-2, atol=5e-2), \
            float(jnp.max(jnp.abs(out_bf16 - ref)))

    print("KERNEL_OK")
</pallas_src>

<mosaic_0001>
module attributes {stable_mosaic.version = 11 : i64} {
  func.func @_local_op_kernel(%arg0: i32, %arg1: memref<128x16xf32, #tpu.memory_space<vmem>>, %arg2: memref<16x128xf32, #tpu.memory_space<vmem>>, %arg3: memref<128x128xf32, #tpu.memory_space<vmem>>, %arg4: memref<1x128xf32, #tpu.memory_space<vmem>>, %arg5: memref<1x128xf32, #tpu.memory_space<vmem>>, %arg6: memref<8x128xf32, #tpu.memory_space<vmem>>) attributes {dimension_semantics = [#tpu.dimension_semantics<parallel>], iteration_bounds = array<i64: 1>, scalar_prefetch = 0 : i64, scratch_operands = 0 : i64, tpu.core_type = #tpu.core_type<tc>, window_params = [{transform_indices = @transform_0, window_bounds = array<i64: 128, 16>}, {pipeline_mode = #tpu.pipeline_mode<synchronous>, transform_indices = @transform_1, window_bounds = array<i64: 16, 128>}, {pipeline_mode = #tpu.pipeline_mode<synchronous>, transform_indices = @transform_2, window_bounds = array<i64: 128, 128>}, {pipeline_mode = #tpu.pipeline_mode<synchronous>, transform_indices = @transform_3, window_bounds = array<i64: 1, 128>}, {pipeline_mode = #tpu.pipeline_mode<synchronous>, transform_indices = @transform_4, window_bounds = array<i64: 1, 128>}, {transform_indices = @transform_5, window_bounds = array<i64: 8, 128>}]} {
    %c0 = arith.constant 0 : index
    %c0_0 = arith.constant 0 : index
    %0 = vector.load %arg2[%c0, %c0_0] : memref<16x128xf32, #tpu.memory_space<vmem>>, vector<16x128xf32>
    %c0_1 = arith.constant 0 : index
    %c0_2 = arith.constant 0 : index
    %1 = vector.load %arg3[%c0_1, %c0_2] : memref<128x128xf32, #tpu.memory_space<vmem>>, vector<128x128xf32>
    %c0_3 = arith.constant 0 : index
    %c0_4 = arith.constant 0 : index
    %2 = vector.load %arg4[%c0_3, %c0_4] : memref<1x128xf32, #tpu.memory_space<vmem>>, vector<1x128xf32>
    %c0_5 = arith.constant 0 : index
    %c0_6 = arith.constant 0 : index
    %3 = vector.load %arg5[%c0_5, %c0_6] : memref<1x128xf32, #tpu.memory_space<vmem>>, vector<1x128xf32>
    %c0_7 = arith.constant 0 : index
    %c0_8 = arith.constant 0 : index
    %4 = vector.load %arg1[%c0_7, %c0_8] : memref<128x16xf32, #tpu.memory_space<vmem>>, vector<128x16xf32>
    %cst = arith.constant dense<0.000000e+00> : vector<128x128xf32>
    %5 = tpu.matmul %4, %0, %cst {dimension_numbers = #tpu.dot_dimension_numbers<[1], [0], [0], [1], [0, 0, 1, 1], [], []>} : vector<128x16xf32>, vector<16x128xf32>, vector<128x128xf32> -> vector<128x128xf32>
    %6 = vector.broadcast %2 : vector<1x128xf32> to vector<128x128xf32>
    %7 = arith.addf %5, %6 : vector<128x128xf32>
    %cst_9 = arith.constant 0.000000e+00 : f32
    %8 = vector.broadcast %cst_9 : f32 to vector<128x128xf32>
    %9 = arith.maximumf %7, %8 : vector<128x128xf32>
    %cst_10 = arith.constant dense<0.000000e+00> : vector<128x128xf32>
    %10 = tpu.matmul %9, %1, %cst_10 {dimension_numbers = #tpu.dot_dimension_numbers<[1], [0], [0], [1], [0, 0, 1, 1], [], []>} : vector<128x128xf32>, vector<128x128xf32>, vector<128x128xf32> -> vector<128x128xf32>
    %11 = vector.broadcast %3 : vector<1x128xf32> to vector<128x128xf32>
    %12 = arith.addf %10, %11 : vector<128x128xf32>
    %cst_11 = arith.constant 0.000000e+00 : f32
    %13 = vector.broadcast %cst_11 : f32 to vector<128x128xf32>
    %14 = arith.maximumf %12, %13 : vector<128x128xf32>
    %15 = vector.shape_cast %14 : vector<128x128xf32> to vector<8x16x128xf32>
    %cst_12 = arith.constant dense<0xFF800000> : vector<8x128xf32>
    %16 = vector.multi_reduction <maximumf>, %15, %cst_12 [1] : vector<8x16x128xf32> to vector<8x128xf32>
    %c0_13 = arith.constant 0 : index
    %c0_14 = arith.constant 0 : index
    %17 = vector.load %arg6[%c0_13, %c0_14] : memref<8x128xf32, #tpu.memory_space<vmem>>, vector<8x128xf32>
    tpu.vector_store %arg6[%c0_13, %c0_14], %16 {strides = array<i32>} : memref<8x128xf32, #tpu.memory_space<vmem>>, vector<8x128xf32>,
    return
  }
  func.func @transform_0(%arg0: i32) -> (i32, i32) {
    %c0_i32 = arith.constant 0 : i32
    %c0_i32_0 = arith.constant 0 : i32
    return %arg0, %c0_i32 : i32, i32
  }
  func.func @transform_1(%arg0: i32) -> (i32, i32) {
    %c0_i32 = arith.constant 0 : i32
    %c0_i32_0 = arith.constant 0 : i32
    %c0_i32_1 = arith.constant 0 : i32
    return %c0_i32, %c0_i32_0 : i32, i32
  }
  func.func @transform_2(%arg0: i32) -> (i32, i32) {
    %c0_i32 = arith.constant 0 : i32
    %c0_i32_0 = arith.constant 0 : i32
    %c0_i32_1 = arith.constant 0 : i32
    return %c0_i32, %c0_i32_0 : i32, i32
  }
  func.func @transform_3(%arg0: i32) -> (i32, i32) {
    %c0_i32 = arith.constant 0 : i32
    %c0_i32_0 = arith.constant 0 : i32
    %c0_i32_1 = arith.constant 0 : i32
    return %c0_i32, %c0_i32_0 : i32, i32
  }
  func.func @transform_4(%arg0: i32) -> (i32, i32) {
    %c0_i32 = arith.constant 0 : i32
    %c0_i32_0 = arith.constant 0 : i32
    %c0_i32_1 = arith.constant 0 : i32
    return %c0_i32, %c0_i32_0 : i32, i32
  }
  func.func @transform_5(%arg0: i32) -> (i32, i32) {
    %c0_i32 = arith.constant 0 : i32
    %c0_i32_0 = arith.constant 0 : i32
    return %arg0, %c0_i32 : i32, i32
  }
}

</mosaic_0001>

<llo_original>
// kernel: tpu_custom_call.1
$region0: #{tpu_custom_call.1}
  #allocation0 [shape = 'u32[]', space=smem, size = 0x4, offset = 0x4, fixed_abs, tag = 'smem constant byte address 0x4 - core index']
  #allocation1 [shape = 'u32[144,128]{1,0:T(1,128)}', space=vmem, size = 0x12000, scoped, tag = 'internal scratch']
  %s0 = inlined_call_operand.vmem [shape: f32[128,16], index: 0, kind: input, shape index: {}]
  %s1 = inlined_call_operand.vmem [shape: f32[16,128], index: 1, kind: input, shape index: {}]
  %s2 = inlined_call_operand.vmem [shape: f32[128,128], index: 2, kind: input, shape index: {}]
  %s3 = inlined_call_operand.vmem [shape: f32[1,128], index: 3, kind: input, shape index: {}]
  %s4 = inlined_call_operand.vmem [shape: f32[1,128], index: 4, kind: input, shape index: {}]
  %s5 = inlined_call_operand.hbm [shape: f32[8,128], index: 5, kind: output, shape index: {}]
  %s6 = sld [smem:[#allocation0]]
  $region30: #{tpu_custom_call.1} parent=0
    _
  %s8 = ssub.s32 1, %s6
  %s9 = scalar_select 0, %s8, %s6
  $region1: #{tpu_custom_call.1} parent=0
    #allocation2 [shape = 'u8[4096]{0}', space=vmem, size = 0x1000, scoped, tag = 'output window, operand 0, single buffered']
    #allocation3 [shape = 's32[1]{0}', space=sflag, size = 0x4, scoped, tag = 'scoped memory for tpu_custom_call.1']
    %10 = vsyncpa [#allocation3], 0
    // Predicated region
    $region2: #{tpu_custom_call.1} parent=1 // pred_check
      _
    $region3: #{tpu_custom_call.1} parent=1 // pred_check_branch
      %12 = sbr.rel (0) target = $region5
    $region4: #{tpu_custom_call.1} parent=1 // pred_region
      _
    $region5: #{tpu_custom_call.1} parent=1 // pred_fallthru
      _
    // Predicated region
    $region6: #{tpu_custom_call.1} parent=1 // pred_check
      _
    $region7: #{tpu_custom_call.1} parent=1 // pred_check_branch
      %14 = sbr.rel (0) target = $region9
    $region8: #{tpu_custom_call.1} parent=1 // pred_region
      _
    $region9: #{tpu_custom_call.1} parent=1 // pred_fallthru
      _
    // Predicated region
    $region10: #{tpu_custom_call.1} parent=1 // pred_check
      _
    $region11: #{tpu_custom_call.1} parent=1 // pred_check_branch
      %16 = sbr.rel (0) target = $region13
    $region12: #{tpu_custom_call.1} parent=1 // pred_region
      _
    $region13: #{tpu_custom_call.1} parent=1 // pred_fallthru
      _
    // Predicated region
    $region14: #{tpu_custom_call.1} parent=1 // pred_check
      _
    $region15: #{tpu_custom_call.1} parent=1 // pred_check_branch
      %18 = sbr.rel (0) target = $region17
    $region16: #{tpu_custom_call.1} parent=1 // pred_region
      _
    $region17: #{tpu_custom_call.1} parent=1 // pred_fallthru
      _
    // Predicated region
    $region18: #{tpu_custom_call.1} parent=1 // pred_check
      _
    $region19: #{tpu_custom_call.1} parent=1 // pred_check_branch
      %20 = sbr.rel (0) target = $region21
    $region20: #{tpu_custom_call.1} parent=1 // pred_region
      _
    $region21: #{tpu_custom_call.1} parent=1 // pred_fallthru
      _
    %v21 = vld [vmem:[%s1] sm:$0xff]
    %v22 = vld [vmem:[%s1 + $0x8] sm:$0xff]
    %v23 = vld [vmem:[%s2] sm:$0xff]
    %v24 = vld [vmem:[%s2 + $0x8] sm:$0xff]
    %v25 = vld [vmem:[%s2 + $0x10] sm:$0xff]
    %v26 = vld [vmem:[%s2 + $0x18] sm:$0xff]
    %v27 = vld [vmem:[%s2 + $0x20] sm:$0xff]
    %v28 = vld [vmem:[%s2 + $0x28] sm:$0xff]
    %v29 = vld [vmem:[%s2 + $0x30] sm:$0xff]
    %v30 = vld [vmem:[%s2 + $0x38] sm:$0xff]
    %v31 = vld [vmem:[%s2 + $0x40] sm:$0xff]
    %v32 = vld [vmem:[%s2 + $0x48] sm:$0xff]
    %v33 = vld [vmem:[%s2 + $0x50] sm:$0xff]
    %v34 = vld [vmem:[%s2 + $0x58] sm:$0xff]
    %v35 = vld [vmem:[%s2 + $0x60] sm:$0xff]
    %v36 = vld [vmem:[%s2 + $0x68] sm:$0xff]
    %v37 = vld [vmem:[%s2 + $0x70] sm:$0xff]
    %v38 = vld [vmem:[%s2 + $0x78] sm:$0xff]
    %v39 = vld [vmem:[%s3] sm:$0x1]
    %v40 = vld [vmem:[%s4] sm:$0x1]
    %v41 = vld [vmem:[%s0] sm:$0xff]
    %v42 = vld [vmem:[%s0 + $0x8] sm:$0xff]
    %v43 = vld [vmem:[%s0 + $0x10] sm:$0xff]
    %v44 = vld [vmem:[%s0 + $0x18] sm:$0xff]
    %v45 = vld [vmem:[%s0 + $0x20] sm:$0xff]
    %v46 = vld [vmem:[%s0 + $0x28] sm:$0xff]
    %v47 = vld [vmem:[%s0 + $0x30] sm:$0xff]
    %v48 = vld [vmem:[%s0 + $0x38] sm:$0xff]
    %v49 = vld [vmem:[%s0 + $0x40] sm:$0xff]
    %v50 = vld [vmem:[%s0 + $0x48] sm:$0xff]
    %v51 = vld [vmem:[%s0 + $0x50] sm:$0xff]
    %v52 = vld [vmem:[%s0 + $0x58] sm:$0xff]
    %v53 = vld [vmem:[%s0 + $0x60] sm:$0xff]
    %v54 = vld [vmem:[%s0 + $0x68] sm:$0xff]
    %v55 = vld [vmem:[%s0 + $0x70] sm:$0xff]
    %v56 = vld [vmem:[%s0 + $0x78] sm:$0xff]
    %v58 = vlaneseq
    %v59 = vshrl.u32 %v58, 7
    %v60 = vsub.s32 0, %v59
    %v61 = vrot.slane %v39, %v60
    %vm63 = vcmask 130048
    %v65 = vsel %vm63, %v41, 0
    %v68 = vsel %vm63, %v42, 0
    %v71 = vsel %vm63, %v43, 0
    %v74 = vsel %vm63, %v44, 0
    %v77 = vsel %vm63, %v45, 0
    %v80 = vsel %vm63, %v46, 0
    %v83 = vsel %vm63, %v47, 0
    %v86 = vsel %vm63, %v48, 0
    %v89 = vsel %vm63, %v49, 0
    %v92 = vsel %vm63, %v50, 0
    %v95 = vsel %vm63, %v51, 0
    %v98 = vsel %vm63, %v52, 0
    %v101 = vsel %vm63, %v53, 0
    %v104 = vsel %vm63, %v54, 0
    %v107 = vsel %vm63, %v55, 0
    %v110 = vsel %vm63, %v56, 0
    %112 = vmatprep.subr.mxu0 0.0
    %113 = vmatpush1.msra.mxu0 0.0
    %114 = vmatprep.subr.mxu0 0.0
    %115 = vmatpush1.msra.mxu0 0.0
    %116 = vmatprep.subr.mxu0 0.0
    %117 = vmatpush1.msra.mxu0 0.0
    %118 = vmatprep.subr.mxu0 0.0
    %119 = vmatpush1.msra.mxu0 0.0
    %120 = vmatprep.subr.mxu0 0.0
    %121 = vmatpush1.msra.mxu0 0.0
    %122 = vmatprep.subr.mxu0 0.0
    %123 = vmatpush1.msra.mxu0 0.0
    %124 = vmatprep.subr.mxu0 0.0
    %125 = vmatpush1.msra.mxu0 0.0
    %126 = vmatprep.subr.mxu0 0.0
    %127 = vmatpush1.msra.mxu0 0.0
    %128 = vmatprep.subr.mxu0 0.0
    %129 = vmatpush1.msra.mxu0 0.0
    %130 = vmatprep.subr.mxu0 0.0
    %131 = vmatpush1.msra.mxu0 0.0
    %132 = vmatprep.subr.mxu0 0.0
    %133 = vmatpush1.msra.mxu0 0.0
    %134 = vmatprep.subr.mxu0 0.0
    %135 = vmatpush1.msra.mxu0 0.0
    %136 = vmatprep.subr.mxu0 0.0
    %137 = vmatpush1.msra.mxu0 0.0
    %138 = vmatprep.subr.mxu0 0.0
    %139 = vmatpush1.msra.mxu0 0.0
    %140 = vmatprep.subr.mxu0 0.0
    %141 = vmatpush1.msra.mxu0 %v22
    %142 = vmatprep.subr.mxu0 0.0
    %143 = vmatpush1.msra.mxu0 %v21
    %144 = vmatprep.subr.mxu0 0.0
    %145 = vmatpush2.msra.mxu0 0.0
    %146 = vmatprep.subr.mxu0 0.0
    %147 = vmatpush2.msra.mxu0 0.0
    %148 = vmatprep.subr.mxu0 0.0
    %149 = vmatpush2.msra.mxu0 0.0
    %150 = vmatprep.subr.mxu0 0.0
    %151 = vmatpush2.msra.mxu0 0.0
    %152 = vmatprep.subr.mxu0 0.0
    %153 = vmatpush2.msra.mxu0 0.0
    %154 = vmatprep.subr.mxu0 0.0
    %155 = vmatpush2.msra.mxu0 0.0
    %156 = vmatprep.subr.mxu0 0.0
    %157 = vmatpush2.msra.mxu0 0.0
    %158 = vmatprep.subr.mxu0 0.0
    %159 = vmatpush2.msra.mxu0 0.0
    %160 = vmatprep.subr.mxu0 0.0
    %161 = vmatpush2.msra.mxu0 0.0
    %162 = vmatprep.subr.mxu0 0.0
    %163 = vmatpush2.msra.mxu0 0.0
    %164 = vmatprep.subr.mxu0 0.0
    %165 = vmatpush2.msra.mxu0 0.0
    %166 = vmatprep.subr.mxu0 0.0
    %167 = vmatpush2.msra.mxu0 0.0
    %168 = vmatprep.subr.mxu0 0.0
    %169 = vmatpush2.msra.mxu0 0.0
    %170 = vmatprep.subr.mxu0 0.0
    %171 = vmatpush2.msra.mxu0 0.0
    %172 = vmatprep.subr.mxu0 0.0
    %173 = vmatpush2.msra.mxu0 0.0
    %174 = vmatprep.subr.mxu0 0.0
    %175 = vmatpush2.msra.mxu0 0.0
    %176 = vmatprep.mubr.f32.mxu0 0.0
    %177 = vmatmul.mubr.f32.gmra.mxu0 %v65
    %v178 = vpop.f32.mrf.mxu0
    %v179 = vadd.f32 %v61, %v178
    %v180 = vpop.f32.mrf.mxu0
    %181 = vmatprep.mubr.f32.mxu0 0.0
    %182 = vmatmul.mubr.f32.gmra.mxu0 %v68
    %v183 = vpop.f32.mrf.mxu0
    %v184 = vadd.f32 %v61, %v183
    %v185 = vpop.f32.mrf.mxu0
    %186 = vmatprep.mubr.f32.mxu0 0.0
    %187 = vmatmul.mubr.f32.gmra.mxu0 %v71
    %v188 = vpop.f32.mrf.mxu0
    %v189 = vadd.f32 %v61, %v188
    %v190 = vpop.f32.mrf.mxu0
    %191 = vmatprep.mubr.f32.mxu0 0.0
    %192 = vmatmul.mubr.f32.gmra.mxu0 %v74
    %v193 = vpop.f32.mrf.mxu0
    %v194 = vadd.f32 %v61, %v193
    %v195 = vpop.f32.mrf.mxu0
    %196 = vmatprep.mubr.f32.mxu0 0.0
    %197 = vmatmul.mubr.f32.gmra.mxu0 %v77
    %v198 = vpop.f32.mrf.mxu0
    %v199 = vadd.f32 %v61, %v198
    %v200 = vpop.f32.mrf.mxu0
    %201 = vmatprep.mubr.f32.mxu0 0.0
    %202 = vmatmul.mubr.f32.gmra.mxu0 %v80
    %v203 = vpop.f32.mrf.mxu0
    %v204 = vadd.f32 %v61, %v203
    %v205 = vpop.f32.mrf.mxu0
    %206 = vmatprep.mubr.f32.mxu0 0.0
    %207 = vmatmul.mubr.f32.gmra.mxu0 %v83
    %v208 = vpop.f32.mrf.mxu0
    %v209 = vadd.f32 %v61, %v208
    %v210 = vpop.f32.mrf.mxu0
    %211 = vmatprep.mubr.f32.mxu0 0.0
    %212 = vmatmul.mubr.f32.gmra.mxu0 %v86
    %v213 = vpop.f32.mrf.mxu0
    %v214 = vadd.f32 %v61, %v213
    %v215 = vpop.f32.mrf.mxu0
    %216 = vmatprep.mubr.f32.mxu0 0.0
    %217 = vmatmul.mubr.f32.gmra.mxu0 %v89
    %v218 = vpop.f32.mrf.mxu0
    %v219 = vadd.f32 %v61, %v218
    %v220 = vpop.f32.mrf.mxu0
    %221 = vmatprep.mubr.f32.mxu0 0.0
    %222 = vmatmul.mubr.f32.gmra.mxu0 %v92
    %v223 = vpop.f32.mrf.mxu0
    %v224 = vadd.f32 %v61, %v223
    %v225 = vpop.f32.mrf.mxu0
    %226 = vmatprep.mubr.f32.mxu0 0.0
    %227 = vmatmul.mubr.f32.gmra.mxu0 %v95
    %v228 = vpop.f32.mrf.mxu0
    %v229 = vadd.f32 %v61, %v228
    %v230 = vpop.f32.mrf.mxu0
    %231 = vmatprep.mubr.f32.mxu0 0.0
    %232 = vmatmul.mubr.f32.gmra.mxu0 %v98
    %v233 = vpop.f32.mrf.mxu0
    %v234 = vadd.f32 %v61, %v233
    %v235 = vpop.f32.mrf.mxu0
    %236 = vmatprep.mubr.f32.mxu0 0.0
    %237 = vmatmul.mubr.f32.gmra.mxu0 %v101
    %v238 = vpop.f32.mrf.mxu0
    %v239 = vadd.f32 %v61, %v238
    %v240 = vpop.f32.mrf.mxu0
    %241 = vmatprep.mubr.f32.mxu0 0.0
    %242 = vmatmul.mubr.f32.gmra.mxu0 %v104
    %v243 = vpop.f32.mrf.mxu0
    %v244 = vadd.f32 %v61, %v243
    %v245 = vpop.f32.mrf.mxu0
    %246 = vmatprep.mubr.f32.mxu0 0.0
    %247 = vmatmul.mubr.f32.gmra.mxu0 %v107
    %v248 = vpop.f32.mrf.mxu0
    %v249 = vadd.f32 %v61, %v248
    %v250 = vpop.f32.mrf.mxu0
    %251 = vmatprep.mubr.f32.mxu0 0.0
    %252 = vmatmul.mubr.f32.gmra.mxu0 %v110
    %v253 = vpop.f32.mrf.mxu0
    %v254 = vadd.f32 %v61, %v253
    %v255 = vpop.f32.mrf.mxu0
    %256 = vdwg.mxu0
    %v257 = vmax.f32 %v179, 0.0
    %v258 = vmax.f32 %v184, 0.0
    %v259 = vmax.f32 %v189, 0.0
    %v260 = vmax.f32 %v194, 0.0
    %v261 = vmax.f32 %v199, 0.0
    %v262 = vmax.f32 %v204, 0.0
    %v263 = vmax.f32 %v209, 0.0
    %v264 = vmax.f32 %v214, 0.0
    %v265 = vmax.f32 %v219, 0.0
    %v266 = vmax.f32 %v224, 0.0
    %v267 = vmax.f32 %v229, 0.0
    %v268 = vmax.f32 %v234, 0.0
    %v269 = vmax.f32 %v239, 0.0
    %v270 = vmax.f32 %v244, 0.0
    %v271 = vmax.f32 %v249, 0.0
    %v272 = vmax.f32 %v254, 0.0
    %v274 = vlaneseq
    %v275 = vshrl.u32 %v274, 7
    %v276 = vsub.s32 0, %v275
    %v277 = vrot.slane %v40, %v276
    %279 = vmatprep.subr.mxu0 0.0
    %280 = vmatpush1.msra.mxu0 %v38
    %281 = vmatprep.subr.mxu0 0.0
    %282 = vmatpush1.msra.mxu0 %v37
    %283 = vmatprep.subr.mxu0 0.0
    %284 = vmatpush1.msra.mxu0 %v36
    %285 = vmatprep.subr.mxu0 0.0
    %286 = vmatpush1.msra.mxu0 %v35
    %287 = vmatprep.subr.mxu0 0.0
    %288 = vmatpush1.msra.mxu0 %v34
    %289 = vmatprep.subr.mxu0 0.0
    %290 = vmatpush1.msra.mxu0 %v33
    %291 = vmatprep.subr.mxu0 0.0
    %292 = vmatpush1.msra.mxu0 %v32
    %293 = vmatprep.subr.mxu0 0.0
    %294 = vmatpush1.msra.mxu0 %v31
    %295 = vmatprep.subr.mxu0 0.0
    %296 = vmatpush1.msra.mxu0 %v30
    %297 = vmatprep.subr.mxu0 0.0
    %298 = vmatpush1.msra.mxu0 %v29
    %299 = vmatprep.subr.mxu0 0.0
    %300 = vmatpush1.msra.mxu0 %v28
    %301 = vmatprep.subr.mxu0 0.0
    %302 = vmatpush1.msra.mxu0 %v27
    %303 = vmatprep.subr.mxu0 0.0
    %304 = vmatpush1.msra.mxu0 %v26
    %305 = vmatprep.subr.mxu0 0.0
    %306 = vmatpush1.msra.mxu0 %v25
    %307 = vmatprep.subr.mxu0 0.0
    %308 = vmatpush1.msra.mxu0 %v24
    %309 = vmatprep.subr.mxu0 0.0
    %310 = vmatpush1.msra.mxu0 %v23
    %311 = vmatprep.subr.mxu0 0.0
    %312 = vmatpush2.msra.mxu0 0.0
    %313 = vmatprep.subr.mxu0 0.0
    %314 = vmatpush2.msra.mxu0 0.0
    %315 = vmatprep.subr.mxu0 0.0
    %316 = vmatpush2.msra.mxu0 0.0
    %317 = vmatprep.subr.mxu0 0.0
    %318 = vmatpush2.msra.mxu0 0.0
    %319 = vmatprep.subr.mxu0 0.0
    %320 = vmatpush2.msra.mxu0 0.0
    %321 = vmatprep.subr.mxu0 0.0
    %322 = vmatpush2.msra.mxu0 0.0
    %323 = vmatprep.subr.mxu0 0.0
    %324 = vmatpush2.msra.mxu0 0.0
    %325 = vmatprep.subr.mxu0 0.0
    %326 = vmatpush2.msra.mxu0 0.0
    %327 = vmatprep.subr.mxu0 0.0
    %328 = vmatpush2.msra.mxu0 0.0
    %329 = vmatprep.subr.mxu0 0.0
    %330 = vmatpush2.msra.mxu0 0.0
    %331 = vmatprep.subr.mxu0 0.0
    %332 = vmatpush2.msra.mxu0 0.0
    %333 = vmatprep.subr.mxu0 0.0
    %334 = vmatpush2.msra.mxu0 0.0
    %335 = vmatprep.subr.mxu0 0.0
    %336 = vmatpush2.msra.mxu0 0.0
    %337 = vmatprep.subr.mxu0 0.0
    %338 = vmatpush2.msra.mxu0 0.0
    %339 = vmatprep.subr.mxu0 0.0
    %340 = vmatpush2.msra.mxu0 0.0
    %341 = vmatprep.subr.mxu0 0.0
    %342 = vmatpush2.msra.mxu0 0.0
    %343 = vmatprep.mubr.f32.mxu0 0.0
    %344 = vmatmul.mubr.f32.gmra.mxu0 %v257
    %v345 = vpop.f32.mrf.mxu0
    %v346 = vadd.f32 %v277, %v345
    %v347 = vpop.f32.mrf.mxu0
    %348 = vmatprep.mubr.f32.mxu0 0.0
    %349 = vmatmul.mubr.f32.gmra.mxu0 %v258
    %v350 = vpop.f32.mrf.mxu0
    %v351 = vadd.f32 %v277, %v350
    %v352 = vpop.f32.mrf.mxu0
    %353 = vmatprep.mubr.f32.mxu0 0.0
    %354 = vmatmul.mubr.f32.gmra.mxu0 %v259
    %v355 = vpop.f32.mrf.mxu0
    %v356 = vadd.f32 %v277, %v355
    %v357 = vpop.f32.mrf.mxu0
    %358 = vmatprep.mubr.f32.mxu0 0.0
    %359 = vmatmul.mubr.f32.gmra.mxu0 %v260
    %v360 = vpop.f32.mrf.mxu0
    %v361 = vadd.f32 %v277, %v360
    %v362 = vpop.f32.mrf.mxu0
    %363 = vmatprep.mubr.f32.mxu0 0.0
    %364 = vmatmul.mubr.f32.gmra.mxu0 %v261
    %v365 = vpop.f32.mrf.mxu0
    %v366 = vadd.f32 %v277, %v365
    %v367 = vpop.f32.mrf.mxu0
    %368 = vmatprep.mubr.f32.mxu0 0.0
    %369 = vmatmul.mubr.f32.gmra.mxu0 %v262
    %v370 = vpop.f32.mrf.mxu0
    %v371 = vadd.f32 %v277, %v370
    %v372 = vpop.f32.mrf.mxu0
    %373 = vmatprep.mubr.f32.mxu0 0.0
    %374 = vmatmul.mubr.f32.gmra.mxu0 %v263
    %v375 = vpop.f32.mrf.mxu0
    %v376 = vadd.f32 %v277, %v375
    %v377 = vpop.f32.mrf.mxu0
    %378 = vmatprep.mubr.f32.mxu0 0.0
    %379 = vmatmul.mubr.f32.gmra.mxu0 %v264
    %v380 = vpop.f32.mrf.mxu0
    %v381 = vadd.f32 %v277, %v380
    %v382 = vpop.f32.mrf.mxu0
    %383 = vmatprep.mubr.f32.mxu0 0.0
    %384 = vmatmul.mubr.f32.gmra.mxu0 %v265
    %v385 = vpop.f32.mrf.mxu0
    %v386 = vadd.f32 %v277, %v385
    %v387 = vpop.f32.mrf.mxu0
    %388 = vmatprep.mubr.f32.mxu0 0.0
    %389 = vmatmul.mubr.f32.gmra.mxu0 %v266
    %v390 = vpop.f32.mrf.mxu0
    %v391 = vadd.f32 %v277, %v390
    %v392 = vpop.f32.mrf.mxu0
    %393 = vmatprep.mubr.f32.mxu0 0.0
    %394 = vmatmul.mubr.f32.gmra.mxu0 %v267
    %v395 = vpop.f32.mrf.mxu0
    %v396 = vadd.f32 %v277, %v395
    %v397 = vpop.f32.mrf.mxu0
    %398 = vmatprep.mubr.f32.mxu0 0.0
    %399 = vmatmul.mubr.f32.gmra.mxu0 %v268
    %v400 = vpop.f32.mrf.mxu0
    %v401 = vadd.f32 %v277, %v400
    %v402 = vpop.f32.mrf.mxu0
    %403 = vmatprep.mubr.f32.mxu0 0.0
    %404 = vmatmul.mubr.f32.gmra.mxu0 %v269
    %v405 = vpop.f32.mrf.mxu0
    %v406 = vadd.f32 %v277, %v405
    %v407 = vpop.f32.mrf.mxu0
    %408 = vmatprep.mubr.f32.mxu0 0.0
    %409 = vmatmul.mubr.f32.gmra.mxu0 %v270
    %v410 = vpop.f32.mrf.mxu0
    %v411 = vadd.f32 %v277, %v410
    %v412 = vpop.f32.mrf.mxu0
    %413 = vmatprep.mubr.f32.mxu0 0.0
    %414 = vmatmul.mubr.f32.gmra.mxu0 %v271
    %v415 = vpop.f32.mrf.mxu0
    %v416 = vadd.f32 %v277, %v415
    %v417 = vpop.f32.mrf.mxu0
    %418 = vmatprep.mubr.f32.mxu0 0.0
    %419 = vmatmul.mubr.f32.gmra.mxu0 %v272
    %v420 = vpop.f32.mrf.mxu0
    %v421 = vadd.f32 %v277, %v420
    %v422 = vpop.f32.mrf.mxu0
    %423 = vdwg.mxu0
    %v424 = vmax.f32 %v346, 0.0
    %v425 = vmax.f32 %v351, 0.0
    %v426 = vmax.f32 %v356, 0.0
    %v427 = vmax.f32 %v361, 0.0
    %v428 = vmax.f32 %v366, 0.0
    %v429 = vmax.f32 %v371, 0.0
    %v430 = vmax.f32 %v376, 0.0
    %v431 = vmax.f32 %v381, 0.0
    %v432 = vmax.f32 %v386, 0.0
    %v433 = vmax.f32 %v391, 0.0
    %v434 = vmax.f32 %v396, 0.0
    %v435 = vmax.f32 %v401, 0.0
    %v436 = vmax.f32 %v406, 0.0
    %v437 = vmax.f32 %v411, 0.0
    %v438 = vmax.f32 %v416, 0.0
    %v439 = vmax.f32 %v421, 0.0
    %v440 = vmax.f32 %v424, %v425
    %v441 = vrot.slane %v440, 4
    %v442 = vmax.f32 %v440, %v441
    %v443 = vrot.slane %v442, 2
    %v444 = vmax.f32 %v442, %v443
    %v445 = vrot.slane %v444, 1
    %v446 = vmax.f32 %v444, %v445
    %v447 = vmax.f32 %v426, %v427
    %v448 = vrot.slane %v447, 4
    %v449 = vmax.f32 %v447, %v448
    %v450 = vrot.slane %v449, 2
    %v451 = vmax.f32 %v449, %v450
    %v452 = vrot.slane %v451, 1
    %v453 = vmax.f32 %v451, %v452
    %v454 = vmax.f32 %v428, %v429
    %v455 = vrot.slane %v454, 4
    %v456 = vmax.f32 %v454, %v455
    %v457 = vrot.slane %v456, 2
    %v458 = vmax.f32 %v456, %v457
    %v459 = vrot.slane %v458, 1
    %v460 = vmax.f32 %v458, %v459
    %v461 = vmax.f32 %v430, %v431
    %v462 = vrot.slane %v461, 4
    %v463 = vmax.f32 %v461, %v462
    %v464 = vrot.slane %v463, 2
    %v465 = vmax.f32 %v463, %v464
    %v466 = vrot.slane %v465, 1
    %v467 = vmax.f32 %v465, %v466
    %v468 = vmax.f32 %v432, %v433
    %v469 = vrot.slane %v468, 4
    %v470 = vmax.f32 %v468, %v469
    %v471 = vrot.slane %v470, 2
    %v472 = vmax.f32 %v470, %v471
    %v473 = vrot.slane %v472, 1
    %v474 = vmax.f32 %v472, %v473
    %v475 = vmax.f32 %v434, %v435
    %v476 = vrot.slane %v475, 4
    %v477 = vmax.f32 %v475, %v476
    %v478 = vrot.slane %v477, 2
    %v479 = vmax.f32 %v477, %v478
    %v480 = vrot.slane %v479, 1
    %v481 = vmax.f32 %v479, %v480
    %v482 = vmax.f32 %v436, %v437
    %v483 = vrot.slane %v482, 4
    %v484 = vmax.f32 %v482, %v483
    %v485 = vrot.slane %v484, 2
    %v486 = vmax.f32 %v484, %v485
    %v487 = vrot.slane %v486, 1
    %v488 = vmax.f32 %v486, %v487
    %v489 = vmax.f32 %v438, %v439
    %v490 = vrot.slane %v489, 4
    %v491 = vmax.f32 %v489, %v490
    %v492 = vrot.slane %v491, 2
    %v493 = vmax.f32 %v491, %v492
    %v494 = vrot.slane %v493, 1
    %v495 = vmax.f32 %v493, %v494
    %vm504 = vcmask 1041409
    %v505 = vsel %vm504, %v453, %v446
    %vm506 = vcmask 1042434
    %v507 = vsel %vm506, %v460, %v505
    %vm508 = vcmask 1043459
    %v509 = vsel %vm508, %v467, %v507
    %vm510 = vcmask 1044484
    %v511 = vsel %vm510, %v474, %v509
    %vm512 = vcmask 1045509
    %v513 = vsel %vm512, %v481, %v511
    %vm514 = vcmask 1046534
    %v515 = vsel %vm514, %v488, %v513
    %vm516 = vcmask 1047559
    %v517 = vsel %vm516, %v495, %v515
    %519 = vst [vmem:[#allocation2] sm:$0xff] %v517
    // Predicated region
    $region22: #{tpu_custom_call.1} parent=1 // pred_check
      _
    $region23: #{tpu_custom_call.1} parent=1 // pred_check_branch
      %521 = sbr.rel (0) target = $region25
    $region24: #{tpu_custom_call.1} parent=1 // pred_region
      %s523 = ssub.s32 128, 128
      %524 = vsyncadd [#allocation3], %s523
      %s526 = sshll.u32 [#allocation2], 4
      %s527 = int_to_ptr.vmem [resolvable:$true] %s526
      %529 = dma.vmem_to_hbm [thread:$0]  %s527, 128, %s5, [#allocation3]
    $region25: #{tpu_custom_call.1} parent=1 // pred_fallthru
      _
    // Predicated region
    $region26: #{tpu_custom_call.1} parent=1 // pred_check
      _
    $region27: #{tpu_custom_call.1} parent=1 // pred_check_branch
      %531 = sbr.rel (0) target = $region29
    $region28: #{tpu_custom_call.1} parent=1 // pred_region
      %532 = dma.done [#allocation3], 128
    $region29: #{tpu_custom_call.1} parent=1 // pred_fallthru
      _
    %533 = vsyncpa [#allocation3], 1

</llo_original>
